<compile_context>
chip_gen: v7x
topology: tpu7x:2x2x1
jax: 0.10.0
libtpu: 0.0.40
codegen_flags: <defaults>
</compile_context>

<pallas_src>
import functools

import jax
import jax.numpy as jnp
from jax.experimental import pallas as pl
from jax.experimental.pallas import tpu as pltpu


# ---------------------------------------------------------------------------
# Kernel body: elementwise hard-swish.  relu6(x+3)/6 == clip(x+3, 0, 6)*(1/6).
# Compute in f32 (free on a mem-bound op), store in the output dtype.
# ---------------------------------------------------------------------------
def _h_swish_kernel(x_ref, o_ref):
    x = x_ref[...].astype(jnp.float32)
    y = x * (jnp.clip(x + 3.0, 0.0, 6.0) * (1.0 / 6.0))
    o_ref[...] = y.astype(o_ref.dtype)


def _h_swish_xla(x, out_dtype=None):
    """Fused-XLA fallback; identical formula / identical f32 internal math."""
    out_dtype = x.dtype if out_dtype is None else out_dtype
    xf = x.astype(jnp.float32)
    y = xf * (jnp.clip(xf + 3.0, 0.0, 6.0) * (1.0 / 6.0))
    return y.astype(out_dtype)


@functools.lru_cache(maxsize=1)
def _block_cap_bytes():
    """Per-generation block-size cap.  4 MiB is safe on every generation
    (2 in + 2 out buffers = 16 MiB <= the 32 MiB vmem limit we request, well
    under physical VMEM everywhere).  On v7x-class chips (64 MiB physical VMEM
    per TC, ~3.2 TB/s HBM) slightly larger blocks amortize the ~0.35 us
    per-grid-step overhead better."""
    cap = 4 << 20
    try:
        vmem = int(pltpu.get_tpu_info().vmem_capacity_bytes)
        if vmem <= (64 << 20):  # v7x-class TensorCore
            cap = 6 << 20
    except Exception:
        pass
    return cap


def _make_index_map(nd, grid_axes):
    def build(*gidx):
        full = [0] * nd
        for g, ax in zip(gidx, grid_axes):
            full[ax] = g
        return tuple(full)

    n = len(grid_axes)
    if n == 1:
        return lambda i: build(i)
    if n == 2:
        return lambda i, j: build(i, j)
    if n == 3:
        return lambda i, j, k: build(i, j, k)
    if n == 4:
        return lambda i, j, k, l: build(i, j, k, l)
    return build


def _choose_block_and_grid(shape, itemsize, target_bytes):
    """Pick a block whose last two dims are the full array dims whenever
    possible (no (8,128) divisibility requirement, no relayout), then grow the
    leading dims (innermost first) until ~target_bytes per block.  Only tiles
    the trailing dims when a single (R, C) slab alone would blow the budget."""
    nd = len(shape)
    R, C = shape[-2], shape[-1]

    # Lane (last) dim: full unless one row alone blows the budget; a tiled lane
    # block must be a multiple of 128.
    if C * itemsize > 2 * target_bytes:
        bc = min(C, max(128, ((target_bytes // itemsize) // 128) * 128))
    else:
        bc = C

    # Sublane (second-to-last) dim: full if it fits, else a multiple of 8.
    if bc == C and R * C * itemsize <= target_bytes:
        br = R
    else:
        br = min(R, max(8, ((target_bytes // (bc * itemsize)) // 8) * 8))

    block = [1] * nd
    block[-2], block[-1] = br, bc
    blk_bytes = br * bc * itemsize

    # Grow leading dims while the block stays under the target.
    if br == R and bc == C:
        for ax in range(nd - 3, -1, -1):
            if blk_bytes >= target_bytes:
                break
            take = int(min(shape[ax], max(1, target_bytes // blk_bytes)))
            block[ax] = take
            blk_bytes *= take
            if take < shape[ax]:
                break

    grid_axes = [ax for ax in range(nd) if block[ax] < shape[ax]]
    if not grid_axes:  # whole array fits in a single block
        grid_axes = [0]
    grid = tuple(pl.cdiv(shape[ax], block[ax]) for ax in grid_axes)
    return tuple(block), grid, _make_index_map(nd, grid_axes)


def h_swish(x, *, fast_path_bytes=1 << 20, min_grid_steps=8,
            min_block_bytes=256 << 10, block_cap_bytes=None):
    """Hard-swish y = x * relu6(x + 3) / 6 on an arbitrarily shaped array."""
    if x.size == 0:
        return x

    # Integer inputs: PyTorch's `/ 6` promotes to float; do the same (f32 out).
    if not jnp.issubdtype(x.dtype, jnp.floating):
        return _h_swish_xla(x, out_dtype=jnp.float32)

    dtype = x.dtype
    itemsize = jnp.dtype(dtype).itemsize
    nbytes = x.size * itemsize

    # Tiny (or < 2-D) tensors: a fused XLA elementwise op beats a kernel launch.
    if x.ndim < 2 or nbytes <= fast_path_bytes:
        return _h_swish_xla(x)

    cap = block_cap_bytes if block_cap_bytes is not None else _block_cap_bytes()
    # Aim for >= min_grid_steps blocks (pipeline overlap + megacore sharding),
    # bounded below by min_block_bytes (per-step overhead) and above by cap.
    target = max(min_block_bytes, min(cap, nbytes // min_grid_steps))

    block, grid, index_map = _choose_block_and_grid(x.shape, itemsize, target)
    spec = pl.BlockSpec(block, index_map)

    return pl.pallas_call(
        _h_swish_kernel,
        out_shape=jax.ShapeDtypeStruct(x.shape, dtype),
        grid=grid,
        in_specs=[spec],
        out_specs=spec,
        # TODO(synk): expose input_output_aliases={0: 0} for callers that can
        # donate x (halves peak HBM footprint; same read+write bandwidth).
        compiler_params=pltpu.CompilerParams(
            dimension_semantics=("parallel",) * len(grid),
            vmem_limit_bytes=32 << 20,
        ),
    )(x)


def h_swish_ref(x):
    xf = x.astype(jnp.float32)
    return xf * (jnp.clip(xf + 3.0, 0.0, 6.0) / 6.0)


if __name__ == "__main__":
    key = jax.random.PRNGKey(0)
    k1, k2, k3, k4, k5 = jax.random.split(key, 5)

    # 1) Small NCHW input, as the PyTorch module would receive it (fast path).
    x_small = jax.random.normal(k1, (2, 4, 16, 16), dtype=jnp.float32) * 4.0
    y_small = jax.block_until_ready(h_swish(x_small))
    assert y_small.shape == x_small.shape and y_small.dtype == x_small.dtype
    assert jnp.allclose(y_small, h_swish_ref(x_small), atol=1e-5, rtol=1e-5)

    # 2) NCHW with ragged spatial dims, forced through the Pallas kernel
    #    (native 4-D path: block = (1, C, H, W), grid over N, no pad/reshape).
    x_nchw = jax.random.normal(k2, (8, 32, 36, 36), dtype=jnp.float32) * 4.0
    y_nchw = jax.block_until_ready(h_swish(x_nchw, fast_path_bytes=0))
    assert y_nchw.shape == x_nchw.shape and y_nchw.dtype == x_nchw.dtype
    assert jnp.allclose(y_nchw, h_swish_ref(x_nchw), atol=1e-5, rtol=1e-5)

    # 3) 2-D matrix, forced through the kernel (row-tiled path: block rows are
    #    a multiple of 8; the ragged final block is masked by Pallas).
    x_2d = jax.random.normal(k3, (512, 384), dtype=jnp.float32) * 4.0
    y_2d = jax.block_until_ready(h_swish(x_2d, fast_path_bytes=0))
    assert y_2d.shape == x_2d.shape and y_2d.dtype == x_2d.dtype
    assert jnp.allclose(y_2d, h_swish_ref(x_2d), atol=1e-5, rtol=1e-5)

    # 4) bf16 input through the kernel: math in f32 internally, stored as bf16
    #    (same formula as the fast path, so path choice never changes results).
    x_bf16 = (jax.random.normal(k4, (4, 48, 36, 36), dtype=jnp.float32) * 4.0
              ).astype(jnp.bfloat16)
    y_bf16 = jax.block_until_ready(h_swish(x_bf16, fast_path_bytes=0))
    assert y_bf16.shape == x_bf16.shape and y_bf16.dtype == jnp.bfloat16
    assert jnp.allclose(y_bf16.astype(jnp.float32), h_swish_ref(x_bf16),
                        atol=0.1, rtol=0.05)

    # 5) Totally unaligned small shape, forced through the kernel (single
    #    whole-array block: last-two block dims equal the full array dims).
    x_odd = jax.random.normal(k5, (3, 5, 17, 19), dtype=jnp.float32) * 4.0
    y_odd = jax.block_until_ready(h_swish(x_odd, fast_path_bytes=0))
    assert y_odd.shape == x_odd.shape and y_odd.dtype == x_odd.dtype
    assert jnp.allclose(y_odd, h_swish_ref(x_odd), atol=1e-5, rtol=1e-5)

    print("KERNEL_OK")
</pallas_src>

<mosaic_0001>
module attributes {stable_mosaic.version = 11 : i64} {
  func.func @_h_swish_kernel(%arg0: i32, %arg1: memref<1x32x36x36xf32, #tpu.memory_space<vmem>>, %arg2: memref<1x32x36x36xf32, #tpu.memory_space<vmem>>) attributes {dimension_semantics = [#tpu.dimension_semantics<parallel>], iteration_bounds = array<i64: 8>, scalar_prefetch = 0 : i64, scratch_operands = 0 : i64, tpu.core_type = #tpu.core_type<tc>, window_params = [{transform_indices = @transform_0, window_bounds = array<i64: 1, 32, 36, 36>}, {transform_indices = @transform_1, window_bounds = array<i64: 1, 32, 36, 36>}]} {
    %c0 = arith.constant 0 : index
    %c0_0 = arith.constant 0 : index
    %c0_1 = arith.constant 0 : index
    %c0_2 = arith.constant 0 : index
    %0 = vector.load %arg1[%c0, %c0_0, %c0_1, %c0_2] : memref<1x32x36x36xf32, #tpu.memory_space<vmem>>, vector<1x32x36x36xf32>
    %cst = arith.constant 3.000000e+00 : f32
    %1 = vector.broadcast %cst : f32 to vector<1x32x36x36xf32>
    %2 = arith.addf %0, %1 : vector<1x32x36x36xf32>
    %cst_3 = arith.constant 0.000000e+00 : f32
    %cst_4 = arith.constant 6.000000e+00 : f32
    %3 = vector.broadcast %cst_3 : f32 to vector<1x32x36x36xf32>
    %4 = arith.maximumf %3, %2 : vector<1x32x36x36xf32>
    %5 = vector.broadcast %cst_4 : f32 to vector<1x32x36x36xf32>
    %6 = arith.minimumf %5, %4 : vector<1x32x36x36xf32>
    %cst_5 = arith.constant 0.166666672 : f32
    %7 = vector.broadcast %cst_5 : f32 to vector<1x32x36x36xf32>
    %8 = arith.mulf %6, %7 : vector<1x32x36x36xf32>
    %9 = arith.mulf %0, %8 : vector<1x32x36x36xf32>
    %c0_6 = arith.constant 0 : index
    %c0_7 = arith.constant 0 : index
    %c0_8 = arith.constant 0 : index
    %c0_9 = arith.constant 0 : index
    %10 = vector.load %arg2[%c0_6, %c0_7, %c0_8, %c0_9] : memref<1x32x36x36xf32, #tpu.memory_space<vmem>>, vector<1x32x36x36xf32>
    tpu.vector_store %arg2[%c0_6, %c0_7, %c0_8, %c0_9], %9 {strides = array<i32>} : memref<1x32x36x36xf32, #tpu.memory_space<vmem>>, vector<1x32x36x36xf32>,
    return
  }
  func.func @transform_0(%arg0: i32) -> (i32, i32, i32, i32) {
    %c0_i32 = arith.constant 0 : i32
    %c0_i32_0 = arith.constant 0 : i32
    %c0_i32_1 = arith.constant 0 : i32
    %c0_i32_2 = arith.constant 0 : i32
    return %arg0, %c0_i32, %c0_i32_0, %c0_i32_1 : i32, i32, i32, i32
  }
  func.func @transform_1(%arg0: i32) -> (i32, i32, i32, i32) {
    %c0_i32 = arith.constant 0 : i32
    %c0_i32_0 = arith.constant 0 : i32
    %c0_i32_1 = arith.constant 0 : i32
    %c0_i32_2 = arith.constant 0 : i32
    return %arg0, %c0_i32, %c0_i32_0, %c0_i32_1 : i32, i32, i32, i32
  }
}

</mosaic_0001>

<llo_original>
// kernel: tpu_custom_call.1
$region0: #{tpu_custom_call.1}
  #allocation0 [shape = 'u32[]', space=smem, size = 0x4, offset = 0x4, fixed_abs, tag = 'smem constant byte address 0x4 - core index']
  #allocation1 [shape = 'u32[144,128]{1,0:T(1,128)}', space=vmem, size = 0x12000, scoped, tag = 'internal scratch']
  %s0 = inlined_call_operand.vmem [shape: f32[8,32,36,36], index: 0, kind: input, shape index: {}]
  %s1 = inlined_call_operand.vmem [shape: f32[8,32,36,36], index: 1, kind: output, shape index: {}]
  %s2 = sld [smem:[#allocation0]]
  $region37: #{tpu_custom_call.1} parent=0
    _
  %s4 = ssub.s32 1, %s2
  %s5 = scalar_select 0, %s4, %s2
  loop: start=0, step=1, limit=10
  $region2: #{tpu_custom_call.1} parent=0 // loop_pre_header
    _
  $region3: #{tpu_custom_call.1} parent=0 // loop_header
    %s7 = sphi 0, %s11
    %p8 = scmp.ge.s32.totalorder %s7, 10
    %s17 = sphi 0, %s19
    %s20 = sphi 0, %s17
    %s21 = sphi 0, %s20
    %s37 = sphi 0, %s21
    %s43 = sphi 0, %s45
    %s46 = sphi 0, %s43
    %s47 = sphi 0, %s46
    %s63 = sphi 0, %s47
  $region4: #{tpu_custom_call.1} parent=0 // loop_header_branch
    %10 = sbr.rel (%p8) target = $region8
  $region5: #{tpu_custom_call.1} parent=0 // loop_body
    %s12 = ssub.s32 %s7, 1
    %s13 = ssub.s32 %s7, 2
    %s14 = sadd.s32 %s7, 1
    %s15 = ssub.s32 %s7, %s14
    %p16 = scmp.eq.s32.totalorder %s15, 0
    %s18 = sadd.s32 %s17, 1
    %s19 = scalar_select %p16, %s17, %s18
    %p22 = pneg %p16
    %p23 = scmp.eq.s32.totalorder %s7, 7
    %p24 = por %p22, %p23
    %p25 = scmp.ne.s32.totalorder %s17, %s20
    %p26 = scmp.eq.s32.totalorder %s7, 0
    %p27 = por %p25, %p26
    %p28 = scmp.ne.s32.totalorder %s17, %s20
    %p29 = scmp.eq.s32.totalorder %s12, 7
    %p30 = por %p28, %p29
    %p31 = scmp.ne.s32.totalorder %s20, %s21
    %p32 = scmp.eq.s32.totalorder %s12, 0
    %p33 = por %p31, %p32
    %p34 = scmp.ne.s32.totalorder %s20, %s21
    %p35 = scmp.eq.s32.totalorder %s13, 7
    %p36 = por %p34, %p35
    %p38 = scmp.ne.s32.totalorder %s21, %s37
    %p39 = scmp.eq.s32.totalorder %s13, 0
    %p40 = por %p38, %p39
    %s41 = ssub.s32 %s7, %s14
    %p42 = scmp.eq.s32.totalorder %s41, 0
    %s44 = sadd.s32 %s43, 1
    %s45 = scalar_select %p42, %s43, %s44
    %p48 = pneg %p42
    %p49 = scmp.eq.s32.totalorder %s7, 7
    %p50 = por %p48, %p49
    %p51 = scmp.ne.s32.totalorder %s43, %s46
    %p52 = scmp.eq.s32.totalorder %s7, 0
    %p53 = por %p51, %p52
    %p54 = scmp.ne.s32.totalorder %s43, %s46
    %p55 = scmp.eq.s32.totalorder %s12, 7
    %p56 = por %p54, %p55
    %p57 = scmp.ne.s32.totalorder %s46, %s47
    %p58 = scmp.eq.s32.totalorder %s12, 0
    %p59 = por %p57, %p58
    %p60 = scmp.ne.s32.totalorder %s46, %s47
    %p61 = scmp.eq.s32.totalorder %s13, 7
    %p62 = por %p60, %p61
    %p64 = scmp.ne.s32.totalorder %s47, %s63
    %p65 = scmp.eq.s32.totalorder %s13, 0
    %p66 = por %p64, %p65
    %p67 = scmp.le.s32.totalorder 1, %s7
    %p68 = scmp.lt.s32.totalorder %s7, 9
    %p69 = pnand %p67, %p68
    %p70 = pneg %p69
    // Predicated region
    $region9: #{tpu_custom_call.1} parent=5 // pred_check
      _
    $region10: #{tpu_custom_call.1} parent=5 // pred_check_branch
      %72 = sbr.rel (%p69) target = $region12
    $region11: #{tpu_custom_call.1} parent=5 // pred_region
      %s73 = ssub.s32 %s7, 1
    $region12: #{tpu_custom_call.1} parent=5 // pred_fallthru
      _
    %p74 = scmp.lt.s32.totalorder %s7, 8
    // Predicated region
    $region13: #{tpu_custom_call.1} parent=5 // pred_check
      %p75 = pneg %p74
    $region14: #{tpu_custom_call.1} parent=5 // pred_check_branch
      %77 = sbr.rel (%p75) target = $region16
    $region15: #{tpu_custom_call.1} parent=5 // pred_region
      // Predicated region
      $region17: #{tpu_custom_call.1} parent=15 // pred_check
        %p78 = pneg %p27
      $region18: #{tpu_custom_call.1} parent=15 // pred_check_branch
        %80 = sbr.rel (%p78) target = $region20
      $region19: #{tpu_custom_call.1} parent=15 // pred_region
        %p81 = scmp.lt.s32.totalorder %s7, 7
        %s82 = scalar_select %p81, %s7, 7
        %s83 = smul.addr %s82, 160
        %s84 = smul.addr %s83, 8
        %s85 = scalar_lea.vmem %s0, %s84
      $region20: #{tpu_custom_call.1} parent=15 // pred_fallthru
        _
    $region16: #{tpu_custom_call.1} parent=5 // pred_fallthru
      _
    %p86 = scmp.le.s32.totalorder 1, %s7
    %p87 = scmp.lt.s32.totalorder %s7, 9
    %p88 = pnand %p86, %p87
    %p89 = pneg %p88
    // Predicated region
    $region21: #{tpu_custom_call.1} parent=5 // pred_check
      _
    $region22: #{tpu_custom_call.1} parent=5 // pred_check_branch
      %91 = sbr.rel (%p88) target = $region24
    $region23: #{tpu_custom_call.1} parent=5 // pred_region
      %s92 = ssub.s32 %s7, 1
      %p93 = scmp.lt.s32.totalorder %s12, 7
      %s94 = scalar_select %p93, %s12, 7
      %s95 = smul.addr %s94, 160
      %s96 = smul.addr %s95, 8
      %s97 = scalar_lea.vmem %s0, %s96
      %p98 = pneg %p33
      %p99 = pneg %p30
      %p100 = pneg %p59
      %p101 = pneg %p56
      %p102 = scmp.lt.s32.totalorder %s12, 7
      %s103 = scalar_select %p102, %s12, 7
      %s104 = smul.addr %s103, 160
      %s105 = smul.addr %s104, 8
      %s106 = scalar_lea.vmem %s1, %s105
      %p107 = scmp.lt.s32.totalorder %s12, 7
      %s108 = scalar_select %p107, %s12, 7
      %s109 = smul.addr %s108, 160
      %s110 = smul.addr %s109, 8
      %s111 = scalar_lea.vmem %s0, %s110
      %p112 = scmp.lt.s32.totalorder %s12, 7
      %s113 = scalar_select %p112, %s12, 7
      %s114 = smul.addr %s113, 160
      %s115 = smul.addr %s114, 8
      %s116 = scalar_lea.vmem %s1, %s115
      %v117 = vld [vmem:[%s111] sm:$0xff]
      %v118 = vld [vmem:[%s111 + $0x8] sm:$0xff]
      %v119 = vld [vmem:[%s111 + $0x10] sm:$0xff]
      %v120 = vld [vmem:[%s111 + $0x18] sm:$0xff]
      %v121 = vld [vmem:[%s111 + $0x20] sm:$0xf]
      %v122 = vld [vmem:[%s111 + $0x28] sm:$0xff]
      %v123 = vld [vmem:[%s111 + $0x30] sm:$0xff]
      %v124 = vld [vmem:[%s111 + $0x38] sm:$0xff]
      %v125 = vld [vmem:[%s111 + $0x40] sm:$0xff]
      %v126 = vld [vmem:[%s111 + $0x48] sm:$0xf]
      %v127 = vld [vmem:[%s111 + $0x50] sm:$0xff]
      %v128 = vld [vmem:[%s111 + $0x58] sm:$0xff]
      %v129 = vld [vmem:[%s111 + $0x60] sm:$0xff]
      %v130 = vld [vmem:[%s111 + $0x68] sm:$0xff]
      %v131 = vld [vmem:[%s111 + $0x70] sm:$0xf]
      %v132 = vld [vmem:[%s111 + $0x78] sm:$0xff]
      %v133 = vld [vmem:[%s111 + $0x80] sm:$0xff]
      %v134 = vld [vmem:[%s111 + $0x88] sm:$0xff]
      %v135 = vld [vmem:[%s111 + $0x90] sm:$0xff]
      %v136 = vld [vmem:[%s111 + $0x98] sm:$0xf]
      %v137 = vld [vmem:[%s111 + $0xa0] sm:$0xff]
      %v138 = vld [vmem:[%s111 + $0xa8] sm:$0xff]
      %v139 = vld [vmem:[%s111 + $0xb0] sm:$0xff]
      %v140 = vld [vmem:[%s111 + $0xb8] sm:$0xff]
      %v141 = vld [vmem:[%s111 + $0xc0] sm:$0xf]
      %v142 = vld [vmem:[%s111 + $0xc8] sm:$0xff]
      %v143 = vld [vmem:[%s111 + $0xd0] sm:$0xff]
      %v144 = vld [vmem:[%s111 + $0xd8] sm:$0xff]
      %v145 = vld [vmem:[%s111 + $0xe0] sm:$0xff]
      %v146 = vld [vmem:[%s111 + $0xe8] sm:$0xf]
      %v147 = vld [vmem:[%s111 + $0xf0] sm:$0xff]
      %v148 = vld [vmem:[%s111 + $0xf8] sm:$0xff]
      %v149 = vld [vmem:[%s111 + $0x100] sm:$0xff]
      %v150 = vld [vmem:[%s111 + $0x108] sm:$0xff]
      %v151 = vld [vmem:[%s111 + $0x110] sm:$0xf]
      %v152 = vld [vmem:[%s111 + $0x118] sm:$0xff]
      %v153 = vld [vmem:[%s111 + $0x120] sm:$0xff]
      %v154 = vld [vmem:[%s111 + $0x128] sm:$0xff]
      %v155 = vld [vmem:[%s111 + $0x130] sm:$0xff]
      %v156 = vld [vmem:[%s111 + $0x138] sm:$0xf]
      %v157 = vld [vmem:[%s111 + $0x140] sm:$0xff]
      %v158 = vld [vmem:[%s111 + $0x148] sm:$0xff]
      %v159 = vld [vmem:[%s111 + $0x150] sm:$0xff]
      %v160 = vld [vmem:[%s111 + $0x158] sm:$0xff]
      %v161 = vld [vmem:[%s111 + $0x160] sm:$0xf]
      %v162 = vld [vmem:[%s111 + $0x168] sm:$0xff]
      %v163 = vld [vmem:[%s111 + $0x170] sm:$0xff]
      %v164 = vld [vmem:[%s111 + $0x178] sm:$0xff]
      %v165 = vld [vmem:[%s111 + $0x180] sm:$0xff]
      %v166 = vld [vmem:[%s111 + $0x188] sm:$0xf]
      %v167 = vld [vmem:[%s111 + $0x190] sm:$0xff]
      %v168 = vld [vmem:[%s111 + $0x198] sm:$0xff]
      %v169 = vld [vmem:[%s111 + $0x1a0] sm:$0xff]
      %v170 = vld [vmem:[%s111 + $0x1a8] sm:$0xff]
      %v171 = vld [vmem:[%s111 + $0x1b0] sm:$0xf]
      %v172 = vld [vmem:[%s111 + $0x1b8] sm:$0xff]
      %v173 = vld [vmem:[%s111 + $0x1c0] sm:$0xff]
      %v174 = vld [vmem:[%s111 + $0x1c8] sm:$0xff]
      %v175 = vld [vmem:[%s111 + $0x1d0] sm:$0xff]
      %v176 = vld [vmem:[%s111 + $0x1d8] sm:$0xf]
      %v177 = vld [vmem:[%s111 + $0x1e0] sm:$0xff]
      %v178 = vld [vmem:[%s111 + $0x1e8] sm:$0xff]
      %v179 = vld [vmem:[%s111 + $0x1f0] sm:$0xff]
      %v180 = vld [vmem:[%s111 + $0x1f8] sm:$0xff]
      %v181 = vld [vmem:[%s111 + $0x200] sm:$0xf]
      %v182 = vld [vmem:[%s111 + $0x208] sm:$0xff]
      %v183 = vld [vmem:[%s111 + $0x210] sm:$0xff]
      %v184 = vld [vmem:[%s111 + $0x218] sm:$0xff]
      %v185 = vld [vmem:[%s111 + $0x220] sm:$0xff]
      %v186 = vld [vmem:[%s111 + $0x228] sm:$0xf]
      %v187 = vld [vmem:[%s111 + $0x230] sm:$0xff]
      %v188 = vld [vmem:[%s111 + $0x238] sm:$0xff]
      %v189 = vld [vmem:[%s111 + $0x240] sm:$0xff]
      %v190 = vld [vmem:[%s111 + $0x248] sm:$0xff]
      %v191 = vld [vmem:[%s111 + $0x250] sm:$0xf]
      %v192 = vld [vmem:[%s111 + $0x258] sm:$0xff]
      %v193 = vld [vmem:[%s111 + $0x260] sm:$0xff]
      %v194 = vld [vmem:[%s111 + $0x268] sm:$0xff]
      %v195 = vld [vmem:[%s111 + $0x270] sm:$0xff]
      %v196 = vld [vmem:[%s111 + $0x278] sm:$0xf]
      %v197 = vld [vmem:[%s111 + $0x280] sm:$0xff]
      %v198 = vld [vmem:[%s111 + $0x288] sm:$0xff]
      %v199 = vld [vmem:[%s111 + $0x290] sm:$0xff]
      %v200 = vld [vmem:[%s111 + $0x298] sm:$0xff]
      %v201 = vld [vmem:[%s111 + $0x2a0] sm:$0xf]
      %v202 = vld [vmem:[%s111 + $0x2a8] sm:$0xff]
      %v203 = vld [vmem:[%s111 + $0x2b0] sm:$0xff]
      %v204 = vld [vmem:[%s111 + $0x2b8] sm:$0xff]
      %v205 = vld [vmem:[%s111 + $0x2c0] sm:$0xff]
      %v206 = vld [vmem:[%s111 + $0x2c8] sm:$0xf]
      %v207 = vld [vmem:[%s111 + $0x2d0] sm:$0xff]
      %v208 = vld [vmem:[%s111 + $0x2d8] sm:$0xff]
      %v209 = vld [vmem:[%s111 + $0x2e0] sm:$0xff]
      %v210 = vld [vmem:[%s111 + $0x2e8] sm:$0xff]
      %v211 = vld [vmem:[%s111 + $0x2f0] sm:$0xf]
      %v212 = vld [vmem:[%s111 + $0x2f8] sm:$0xff]
      %v213 = vld [vmem:[%s111 + $0x300] sm:$0xff]
      %v214 = vld [vmem:[%s111 + $0x308] sm:$0xff]
      %v215 = vld [vmem:[%s111 + $0x310] sm:$0xff]
      %v216 = vld [vmem:[%s111 + $0x318] sm:$0xf]
      %v217 = vld [vmem:[%s111 + $0x320] sm:$0xff]
      %v218 = vld [vmem:[%s111 + $0x328] sm:$0xff]
      %v219 = vld [vmem:[%s111 + $0x330] sm:$0xff]
      %v220 = vld [vmem:[%s111 + $0x338] sm:$0xff]
      %v221 = vld [vmem:[%s111 + $0x340] sm:$0xf]
      %v222 = vld [vmem:[%s111 + $0x348] sm:$0xff]
      %v223 = vld [vmem:[%s111 + $0x350] sm:$0xff]
      %v224 = vld [vmem:[%s111 + $0x358] sm:$0xff]
      %v225 = vld [vmem:[%s111 + $0x360] sm:$0xff]
      %v226 = vld [vmem:[%s111 + $0x368] sm:$0xf]
      %v227 = vld [vmem:[%s111 + $0x370] sm:$0xff]
      %v228 = vld [vmem:[%s111 + $0x378] sm:$0xff]
      %v229 = vld [vmem:[%s111 + $0x380] sm:$0xff]
      %v230 = vld [vmem:[%s111 + $0x388] sm:$0xff]
      %v231 = vld [vmem:[%s111 + $0x390] sm:$0xf]
      %v232 = vld [vmem:[%s111 + $0x398] sm:$0xff]
      %v233 = vld [vmem:[%s111 + $0x3a0] sm:$0xff]
      %v234 = vld [vmem:[%s111 + $0x3a8] sm:$0xff]
      %v235 = vld [vmem:[%s111 + $0x3b0] sm:$0xff]
      %v236 = vld [vmem:[%s111 + $0x3b8] sm:$0xf]
      %v237 = vld [vmem:[%s111 + $0x3c0] sm:$0xff]
      %v238 = vld [vmem:[%s111 + $0x3c8] sm:$0xff]
      %v239 = vld [vmem:[%s111 + $0x3d0] sm:$0xff]
      %v240 = vld [vmem:[%s111 + $0x3d8] sm:$0xff]
      %v241 = vld [vmem:[%s111 + $0x3e0] sm:$0xf]
      %v242 = vld [vmem:[%s111 + $0x3e8] sm:$0xff]
      %v243 = vld [vmem:[%s111 + $0x3f0] sm:$0xff]
      %v244 = vld [vmem:[%s111 + $0x3f8] sm:$0xff]
      %v245 = vld [vmem:[%s111 + $0x400] sm:$0xff]
      %v246 = vld [vmem:[%s111 + $0x408] sm:$0xf]
      %v247 = vld [vmem:[%s111 + $0x410] sm:$0xff]
      %v248 = vld [vmem:[%s111 + $0x418] sm:$0xff]
      %v249 = vld [vmem:[%s111 + $0x420] sm:$0xff]
      %v250 = vld [vmem:[%s111 + $0x428] sm:$0xff]
      %v251 = vld [vmem:[%s111 + $0x430] sm:$0xf]
      %v252 = vld [vmem:[%s111 + $0x438] sm:$0xff]
      %v253 = vld [vmem:[%s111 + $0x440] sm:$0xff]
      %v254 = vld [vmem:[%s111 + $0x448] sm:$0xff]
      %v255 = vld [vmem:[%s111 + $0x450] sm:$0xff]
      %v256 = vld [vmem:[%s111 + $0x458] sm:$0xf]
      %v257 = vld [vmem:[%s111 + $0x460] sm:$0xff]
      %v258 = vld [vmem:[%s111 + $0x468] sm:$0xff]
      %v259 = vld [vmem:[%s111 + $0x470] sm:$0xff]
      %v260 = vld [vmem:[%s111 + $0x478] sm:$0xff]
      %v261 = vld [vmem:[%s111 + $0x480] sm:$0xf]
      %v262 = vld [vmem:[%s111 + $0x488] sm:$0xff]
      %v263 = vld [vmem:[%s111 + $0x490] sm:$0xff]
      %v264 = vld [vmem:[%s111 + $0x498] sm:$0xff]
      %v265 = vld [vmem:[%s111 + $0x4a0] sm:$0xff]
      %v266 = vld [vmem:[%s111 + $0x4a8] sm:$0xf]
      %v267 = vld [vmem:[%s111 + $0x4b0] sm:$0xff]
      %v268 = vld [vmem:[%s111 + $0x4b8] sm:$0xff]
      %v269 = vld [vmem:[%s111 + $0x4c0] sm:$0xff]
      %v270 = vld [vmem:[%s111 + $0x4c8] sm:$0xff]
      %v271 = vld [vmem:[%s111 + $0x4d0] sm:$0xf]
      %v272 = vld [vmem:[%s111 + $0x4d8] sm:$0xff]
      %v273 = vld [vmem:[%s111 + $0x4e0] sm:$0xff]
      %v274 = vld [vmem:[%s111 + $0x4e8] sm:$0xff]
      %v275 = vld [vmem:[%s111 + $0x4f0] sm:$0xff]
      %v276 = vld [vmem:[%s111 + $0x4f8] sm:$0xf]
      %v277 = vadd.f32 %v117, 3.0
      %v278 = vadd.f32 %v118, 3.0
      %v279 = vadd.f32 %v119, 3.0
      %v280 = vadd.f32 %v120, 3.0
      %v281 = vadd.f32 %v121, 3.0
      %v282 = vadd.f32 %v122, 3.0
      %v283 = vadd.f32 %v123, 3.0
      %v284 = vadd.f32 %v124, 3.0
      %v285 = vadd.f32 %v125, 3.0
      %v286 = vadd.f32 %v126, 3.0
      %v287 = vadd.f32 %v127, 3.0
      %v288 = vadd.f32 %v128, 3.0
      %v289 = vadd.f32 %v129, 3.0
      %v290 = vadd.f32 %v130, 3.0
      %v291 = vadd.f32 %v131, 3.0
      %v292 = vadd.f32 %v132, 3.0
      %v293 = vadd.f32 %v133, 3.0
      %v294 = vadd.f32 %v134, 3.0
      %v295 = vadd.f32 %v135, 3.0
      %v296 = vadd.f32 %v136, 3.0
      %v297 = vadd.f32 %v137, 3.0
      %v298 = vadd.f32 %v138, 3.0
      %v299 = vadd.f32 %v139, 3.0
      %v300 = vadd.f32 %v140, 3.0
      %v301 = vadd.f32 %v141, 3.0
      %v302 = vadd.f32 %v142, 3.0
      %v303 = vadd.f32 %v143, 3.0
      %v304 = vadd.f32 %v144, 3.0
      %v305 = vadd.f32 %v145, 3.0
      %v306 = vadd.f32 %v146, 3.0
      %v307 = vadd.f32 %v147, 3.0
      %v308 = vadd.f32 %v148, 3.0
      %v309 = vadd.f32 %v149, 3.0
      %v310 = vadd.f32 %v150, 3.0
      %v311 = vadd.f32 %v151, 3.0
      %v312 = vadd.f32 %v152, 3.0
      %v313 = vadd.f32 %v153, 3.0
      %v314 = vadd.f32 %v154, 3.0
      %v315 = vadd.f32 %v155, 3.0
      %v316 = vadd.f32 %v156, 3.0
      %v317 = vadd.f32 %v157, 3.0
      %v318 = vadd.f32 %v158, 3.0
      %v319 = vadd.f32 %v159, 3.0
      %v320 = vadd.f32 %v160, 3.0
      %v321 = vadd.f32 %v161, 3.0
      %v322 = vadd.f32 %v162, 3.0
      %v323 = vadd.f32 %v163, 3.0
      %v324 = vadd.f32 %v164, 3.0
      %v325 = vadd.f32 %v165, 3.0
      %v326 = vadd.f32 %v166, 3.0
      %v327 = vadd.f32 %v167, 3.0
      %v328 = vadd.f32 %v168, 3.0
      %v329 = vadd.f32 %v169, 3.0
      %v330 = vadd.f32 %v170, 3.0
      %v331 = vadd.f32 %v171, 3.0
      %v332 = vadd.f32 %v172, 3.0
      %v333 = vadd.f32 %v173, 3.0
      %v334 = vadd.f32 %v174, 3.0
      %v335 = vadd.f32 %v175, 3.0
      %v336 = vadd.f32 %v176, 3.0
      %v337 = vadd.f32 %v177, 3.0
      %v338 = vadd.f32 %v178, 3.0
      %v339 = vadd.f32 %v179, 3.0
      %v340 = vadd.f32 %v180, 3.0
      %v341 = vadd.f32 %v181, 3.0
      %v342 = vadd.f32 %v182, 3.0
      %v343 = vadd.f32 %v183, 3.0
      %v344 = vadd.f32 %v184, 3.0
      %v345 = vadd.f32 %v185, 3.0
      %v346 = vadd.f32 %v186, 3.0
      %v347 = vadd.f32 %v187, 3.0
      %v348 = vadd.f32 %v188, 3.0
      %v349 = vadd.f32 %v189, 3.0
      %v350 = vadd.f32 %v190, 3.0
      %v351 = vadd.f32 %v191, 3.0
      %v352 = vadd.f32 %v192, 3.0
      %v353 = vadd.f32 %v193, 3.0
      %v354 = vadd.f32 %v194, 3.0
      %v355 = vadd.f32 %v195, 3.0
      %v356 = vadd.f32 %v196, 3.0
      %v357 = vadd.f32 %v197, 3.0
      %v358 = vadd.f32 %v198, 3.0
      %v359 = vadd.f32 %v199, 3.0
      %v360 = vadd.f32 %v200, 3.0
      %v361 = vadd.f32 %v201, 3.0
      %v362 = vadd.f32 %v202, 3.0
      %v363 = vadd.f32 %v203, 3.0
      %v364 = vadd.f32 %v204, 3.0
      %v365 = vadd.f32 %v205, 3.0
      %v366 = vadd.f32 %v206, 3.0
      %v367 = vadd.f32 %v207, 3.0
      %v368 = vadd.f32 %v208, 3.0
      %v369 = vadd.f32 %v209, 3.0
      %v370 = vadd.f32 %v210, 3.0
      %v371 = vadd.f32 %v211, 3.0
      %v372 = vadd.f32 %v212, 3.0
      %v373 = vadd.f32 %v213, 3.0
      %v374 = vadd.f32 %v214, 3.0
      %v375 = vadd.f32 %v215, 3.0
      %v376 = vadd.f32 %v216, 3.0
      %v377 = vadd.f32 %v217, 3.0
      %v378 = vadd.f32 %v218, 3.0
      %v379 = vadd.f32 %v219, 3.0
      %v380 = vadd.f32 %v220, 3.0
      %v381 = vadd.f32 %v221, 3.0
      %v382 = vadd.f32 %v222, 3.0
      %v383 = vadd.f32 %v223, 3.0
      %v384 = vadd.f32 %v224, 3.0
      %v385 = vadd.f32 %v225, 3.0
      %v386 = vadd.f32 %v226, 3.0
      %v387 = vadd.f32 %v227, 3.0
      %v388 = vadd.f32 %v228, 3.0
      %v389 = vadd.f32 %v229, 3.0
      %v390 = vadd.f32 %v230, 3.0
      %v391 = vadd.f32 %v231, 3.0
      %v392 = vadd.f32 %v232, 3.0
      %v393 = vadd.f32 %v233, 3.0
      %v394 = vadd.f32 %v234, 3.0
      %v395 = vadd.f32 %v235, 3.0
      %v396 = vadd.f32 %v236, 3.0
      %v397 = vadd.f32 %v237, 3.0
      %v398 = vadd.f32 %v238, 3.0
      %v399 = vadd.f32 %v239, 3.0
      %v400 = vadd.f32 %v240, 3.0
      %v401 = vadd.f32 %v241, 3.0
      %v402 = vadd.f32 %v242, 3.0
      %v403 = vadd.f32 %v243, 3.0
      %v404 = vadd.f32 %v244, 3.0
      %v405 = vadd.f32 %v245, 3.0
      %v406 = vadd.f32 %v246, 3.0
      %v407 = vadd.f32 %v247, 3.0
      %v408 = vadd.f32 %v248, 3.0
      %v409 = vadd.f32 %v249, 3.0
      %v410 = vadd.f32 %v250, 3.0
      %v411 = vadd.f32 %v251, 3.0
      %v412 = vadd.f32 %v252, 3.0
      %v413 = vadd.f32 %v253, 3.0
      %v414 = vadd.f32 %v254, 3.0
      %v415 = vadd.f32 %v255, 3.0
      %v416 = vadd.f32 %v256, 3.0
      %v417 = vadd.f32 %v257, 3.0
      %v418 = vadd.f32 %v258, 3.0
      %v419 = vadd.f32 %v259, 3.0
      %v420 = vadd.f32 %v260, 3.0
      %v421 = vadd.f32 %v261, 3.0
      %v422 = vadd.f32 %v262, 3.0
      %v423 = vadd.f32 %v263, 3.0
      %v424 = vadd.f32 %v264, 3.0
      %v425 = vadd.f32 %v265, 3.0
      %v426 = vadd.f32 %v266, 3.0
      %v427 = vadd.f32 %v267, 3.0
      %v428 = vadd.f32 %v268, 3.0
      %v429 = vadd.f32 %v269, 3.0
      %v430 = vadd.f32 %v270, 3.0
      %v431 = vadd.f32 %v271, 3.0
      %v432 = vadd.f32 %v272, 3.0
      %v433 = vadd.f32 %v273, 3.0
      %v434 = vadd.f32 %v274, 3.0
      %v435 = vadd.f32 %v275, 3.0
      %v436 = vadd.f32 %v276, 3.0
      %v437 = vmax.f32 %v277, 0.0
      %v438 = vmax.f32 %v278, 0.0
      %v439 = vmax.f32 %v279, 0.0
      %v440 = vmax.f32 %v280, 0.0
      %v441 = vmax.f32 %v281, 0.0
      %v442 = vmax.f32 %v282, 0.0
      %v443 = vmax.f32 %v283, 0.0
      %v444 = vmax.f32 %v284, 0.0
      %v445 = vmax.f32 %v285, 0.0
      %v446 = vmax.f32 %v286, 0.0
      %v447 = vmax.f32 %v287, 0.0
      %v448 = vmax.f32 %v288, 0.0
      %v449 = vmax.f32 %v289, 0.0
      %v450 = vmax.f32 %v290, 0.0
      %v451 = vmax.f32 %v291, 0.0
      %v452 = vmax.f32 %v292, 0.0
      %v453 = vmax.f32 %v293, 0.0
      %v454 = vmax.f32 %v294, 0.0
      %v455 = vmax.f32 %v295, 0.0
      %v456 = vmax.f32 %v296, 0.0
      %v457 = vmax.f32 %v297, 0.0
      %v458 = vmax.f32 %v298, 0.0
      %v459 = vmax.f32 %v299, 0.0
      %v460 = vmax.f32 %v300, 0.0
      %v461 = vmax.f32 %v301, 0.0
      %v462 = vmax.f32 %v302, 0.0
      %v463 = vmax.f32 %v303, 0.0
      %v464 = vmax.f32 %v304, 0.0
      %v465 = vmax.f32 %v305, 0.0
      %v466 = vmax.f32 %v306, 0.0
      %v467 = vmax.f32 %v307, 0.0
      %v468 = vmax.f32 %v308, 0.0
      %v469 = vmax.f32 %v309, 0.0
      %v470 = vmax.f32 %v310, 0.0
      %v471 = vmax.f32 %v311, 0.0
      %v472 = vmax.f32 %v312, 0.0
      %v473 = vmax.f32 %v313, 0.0
      %v474 = vmax.f32 %v314, 0.0
      %v475 = vmax.f32 %v315, 0.0
      %v476 = vmax.f32 %v316, 0.0
      %v477 = vmax.f32 %v317, 0.0
      %v478 = vmax.f32 %v318, 0.0
      %v479 = vmax.f32 %v319, 0.0
      %v480 = vmax.f32 %v320, 0.0
      %v481 = vmax.f32 %v321, 0.0
      %v482 = vmax.f32 %v322, 0.0
      %v483 = vmax.f32 %v323, 0.0
      %v484 = vmax.f32 %v324, 0.0
      %v485 = vmax.f32 %v325, 0.0
      %v486 = vmax.f32 %v326, 0.0
      %v487 = vmax.f32 %v327, 0.0
      %v488 = vmax.f32 %v328, 0.0
      %v489 = vmax.f32 %v329, 0.0
      %v490 = vmax.f32 %v330, 0.0
      %v491 = vmax.f32 %v331, 0.0
      %v492 = vmax.f32 %v332, 0.0
      %v493 = vmax.f32 %v333, 0.0
      %v494 = vmax.f32 %v334, 0.0
      %v495 = vmax.f32 %v335, 0.0
      %v496 = vmax.f32 %v336, 0.0
      %v497 = vmax.f32 %v337, 0.0
      %v498 = vmax.f32 %v338, 0.0
      %v499 = vmax.f32 %v339, 0.0
      %v500 = vmax.f32 %v340, 0.0
      %v501 = vmax.f32 %v341, 0.0
      %v502 = vmax.f32 %v342, 0.0
      %v503 = vmax.f32 %v343, 0.0
      %v504 = vmax.f32 %v344, 0.0
      %v505 = vmax.f32 %v345, 0.0
      %v506 = vmax.f32 %v346, 0.0
      %v507 = vmax.f32 %v347, 0.0
      %v508 = vmax.f32 %v348, 0.0
      %v509 = vmax.f32 %v349, 0.0
      %v510 = vmax.f32 %v350, 0.0
      %v511 = vmax.f32 %v351, 0.0
      %v512 = vmax.f32 %v352, 0.0
      %v513 = vmax.f32 %v353, 0.0
      %v514 = vmax.f32 %v354, 0.0
      %v515 = vmax.f32 %v355, 0.0
      %v516 = vmax.f32 %v356, 0.0
      %v517 = vmax.f32 %v357, 0.0
      %v518 = vmax.f32 %v358, 0.0
      %v519 = vmax.f32 %v359, 0.0
      %v520 = vmax.f32 %v360, 0.0
      %v521 = vmax.f32 %v361, 0.0
      %v522 = vmax.f32 %v362, 0.0
      %v523 = vmax.f32 %v363, 0.0
      %v524 = vmax.f32 %v364, 0.0
      %v525 = vmax.f32 %v365, 0.0
      %v526 = vmax.f32 %v366, 0.0
      %v527 = vmax.f32 %v367, 0.0
      %v528 = vmax.f32 %v368, 0.0
      %v529 = vmax.f32 %v369, 0.0
      %v530 = vmax.f32 %v370, 0.0
      %v531 = vmax.f32 %v371, 0.0
      %v532 = vmax.f32 %v372, 0.0
      %v533 = vmax.f32 %v373, 0.0
      %v534 = vmax.f32 %v374, 0.0
      %v535 = vmax.f32 %v375, 0.0
      %v536 = vmax.f32 %v376, 0.0
      %v537 = vmax.f32 %v377, 0.0
      %v538 = vmax.f32 %v378, 0.0
      %v539 = vmax.f32 %v379, 0.0
      %v540 = vmax.f32 %v380, 0.0
      %v541 = vmax.f32 %v381, 0.0
      %v542 = vmax.f32 %v382, 0.0
      %v543 = vmax.f32 %v383, 0.0
      %v544 = vmax.f32 %v384, 0.0
      %v545 = vmax.f32 %v385, 0.0
      %v546 = vmax.f32 %v386, 0.0
      %v547 = vmax.f32 %v387, 0.0
      %v548 = vmax.f32 %v388, 0.0
      %v549 = vmax.f32 %v389, 0.0
      %v550 = vmax.f32 %v390, 0.0
      %v551 = vmax.f32 %v391, 0.0
      %v552 = vmax.f32 %v392, 0.0
      %v553 = vmax.f32 %v393, 0.0
      %v554 = vmax.f32 %v394, 0.0
      %v555 = vmax.f32 %v395, 0.0
      %v556 = vmax.f32 %v396, 0.0
      %v557 = vmax.f32 %v397, 0.0
      %v558 = vmax.f32 %v398, 0.0
      %v559 = vmax.f32 %v399, 0.0
      %v560 = vmax.f32 %v400, 0.0
      %v561 = vmax.f32 %v401, 0.0
      %v562 = vmax.f32 %v402, 0.0
      %v563 = vmax.f32 %v403, 0.0
      %v564 = vmax.f32 %v404, 0.0
      %v565 = vmax.f32 %v405, 0.0
      %v566 = vmax.f32 %v406, 0.0
      %v567 = vmax.f32 %v407, 0.0
      %v568 = vmax.f32 %v408, 0.0
      %v569 = vmax.f32 %v409, 0.0
      %v570 = vmax.f32 %v410, 0.0
      %v571 = vmax.f32 %v411, 0.0
      %v572 = vmax.f32 %v412, 0.0
      %v573 = vmax.f32 %v413, 0.0
      %v574 = vmax.f32 %v414, 0.0
      %v575 = vmax.f32 %v415, 0.0
      %v576 = vmax.f32 %v416, 0.0
      %v577 = vmax.f32 %v417, 0.0
      %v578 = vmax.f32 %v418, 0.0
      %v579 = vmax.f32 %v419, 0.0
      %v580 = vmax.f32 %v420, 0.0
      %v581 = vmax.f32 %v421, 0.0
      %v582 = vmax.f32 %v422, 0.0
      %v583 = vmax.f32 %v423, 0.0
      %v584 = vmax.f32 %v424, 0.0
      %v585 = vmax.f32 %v425, 0.0
      %v586 = vmax.f32 %v426, 0.0
      %v587 = vmax.f32 %v427, 0.0
      %v588 = vmax.f32 %v428, 0.0
      %v589 = vmax.f32 %v429, 0.0
      %v590 = vmax.f32 %v430, 0.0
      %v591 = vmax.f32 %v431, 0.0
      %v592 = vmax.f32 %v432, 0.0
      %v593 = vmax.f32 %v433, 0.0
      %v594 = vmax.f32 %v434, 0.0
      %v595 = vmax.f32 %v435, 0.0
      %v596 = vmax.f32 %v436, 0.0
      %v597 = vmin.f32 %v437, 6.0
      %v598 = vmin.f32 %v438, 6.0
      %v599 = vmin.f32 %v439, 6.0
      %v600 = vmin.f32 %v440, 6.0
      %v601 = vmin.f32 %v441, 6.0
      %v602 = vmin.f32 %v442, 6.0
      %v603 = vmin.f32 %v443, 6.0
      %v604 = vmin.f32 %v444, 6.0
      %v605 = vmin.f32 %v445, 6.0
      %v606 = vmin.f32 %v446, 6.0
      %v607 = vmin.f32 %v447, 6.0
      %v608 = vmin.f32 %v448, 6.0
      %v609 = vmin.f32 %v449, 6.0
      %v610 = vmin.f32 %v450, 6.0
      %v611 = vmin.f32 %v451, 6.0
      %v612 = vmin.f32 %v452, 6.0
      %v613 = vmin.f32 %v453, 6.0
      %v614 = vmin.f32 %v454, 6.0
      %v615 = vmin.f32 %v455, 6.0
      %v616 = vmin.f32 %v456, 6.0
      %v617 = vmin.f32 %v457, 6.0
      %v618 = vmin.f32 %v458, 6.0
      %v619 = vmin.f32 %v459, 6.0
      %v620 = vmin.f32 %v460, 6.0
      %v621 = vmin.f32 %v461, 6.0
      %v622 = vmin.f32 %v462, 6.0
      %v623 = vmin.f32 %v463, 6.0
      %v624 = vmin.f32 %v464, 6.0
      %v625 = vmin.f32 %v465, 6.0
      %v626 = vmin.f32 %v466, 6.0
      %v627 = vmin.f32 %v467, 6.0
      %v628 = vmin.f32 %v468, 6.0
      %v629 = vmin.f32 %v469, 6.0
      %v630 = vmin.f32 %v470, 6.0
      %v631 = vmin.f32 %v471, 6.0
      %v632 = vmin.f32 %v472, 6.0
      %v633 = vmin.f32 %v473, 6.0
      %v634 = vmin.f32 %v474, 6.0
      %v635 = vmin.f32 %v475, 6.0
      %v636 = vmin.f32 %v476, 6.0
      %v637 = vmin.f32 %v477, 6.0
      %v638 = vmin.f32 %v478, 6.0
      %v639 = vmin.f32 %v479, 6.0
      %v640 = vmin.f32 %v480, 6.0
      %v641 = vmin.f32 %v481, 6.0
      %v642 = vmin.f32 %v482, 6.0
      %v643 = vmin.f32 %v483, 6.0
      %v644 = vmin.f32 %v484, 6.0
      %v645 = vmin.f32 %v485, 6.0
      %v646 = vmin.f32 %v486, 6.0
      %v647 = vmin.f32 %v487, 6.0
      %v648 = vmin.f32 %v488, 6.0
      %v649 = vmin.f32 %v489, 6.0
      %v650 = vmin.f32 %v490, 6.0
      %v651 = vmin.f32 %v491, 6.0
      %v652 = vmin.f32 %v492, 6.0
      %v653 = vmin.f32 %v493, 6.0
      %v654 = vmin.f32 %v494, 6.0
      %v655 = vmin.f32 %v495, 6.0
      %v656 = vmin.f32 %v496, 6.0
      %v657 = vmin.f32 %v497, 6.0
      %v658 = vmin.f32 %v498, 6.0
      %v659 = vmin.f32 %v499, 6.0
      %v660 = vmin.f32 %v500, 6.0
      %v661 = vmin.f32 %v501, 6.0
      %v662 = vmin.f32 %v502, 6.0
      %v663 = vmin.f32 %v503, 6.0
      %v664 = vmin.f32 %v504, 6.0
      %v665 = vmin.f32 %v505, 6.0
      %v666 = vmin.f32 %v506, 6.0
      %v667 = vmin.f32 %v507, 6.0
      %v668 = vmin.f32 %v508, 6.0
      %v669 = vmin.f32 %v509, 6.0
      %v670 = vmin.f32 %v510, 6.0
      %v671 = vmin.f32 %v511, 6.0
      %v672 = vmin.f32 %v512, 6.0
      %v673 = vmin.f32 %v513, 6.0
      %v674 = vmin.f32 %v514, 6.0
      %v675 = vmin.f32 %v515, 6.0
      %v676 = vmin.f32 %v516, 6.0
      %v677 = vmin.f32 %v517, 6.0
      %v678 = vmin.f32 %v518, 6.0
      %v679 = vmin.f32 %v519, 6.0
      %v680 = vmin.f32 %v520, 6.0
      %v681 = vmin.f32 %v521, 6.0
      %v682 = vmin.f32 %v522, 6.0
      %v683 = vmin.f32 %v523, 6.0
      %v684 = vmin.f32 %v524, 6.0
      %v685 = vmin.f32 %v525, 6.0
      %v686 = vmin.f32 %v526, 6.0
      %v687 = vmin.f32 %v527, 6.0
      %v688 = vmin.f32 %v528, 6.0
      %v689 = vmin.f32 %v529, 6.0
      %v690 = vmin.f32 %v530, 6.0
      %v691 = vmin.f32 %v531, 6.0
      %v692 = vmin.f32 %v532, 6.0
      %v693 = vmin.f32 %v533, 6.0
      %v694 = vmin.f32 %v534, 6.0
      %v695 = vmin.f32 %v535, 6.0
      %v696 = vmin.f32 %v536, 6.0
      %v697 = vmin.f32 %v537, 6.0
      %v698 = vmin.f32 %v538, 6.0
      %v699 = vmin.f32 %v539, 6.0
      %v700 = vmin.f32 %v540, 6.0
      %v701 = vmin.f32 %v541, 6.0
      %v702 = vmin.f32 %v542, 6.0
      %v703 = vmin.f32 %v543, 6.0
      %v704 = vmin.f32 %v544, 6.0
      %v705 = vmin.f32 %v545, 6.0
      %v706 = vmin.f32 %v546, 6.0
      %v707 = vmin.f32 %v547, 6.0
      %v708 = vmin.f32 %v548, 6.0
      %v709 = vmin.f32 %v549, 6.0
      %v710 = vmin.f32 %v550, 6.0
      %v711 = vmin.f32 %v551, 6.0
      %v712 = vmin.f32 %v552, 6.0
      %v713 = vmin.f32 %v553, 6.0
      %v714 = vmin.f32 %v554, 6.0
      %v715 = vmin.f32 %v555, 6.0
      %v716 = vmin.f32 %v556, 6.0
      %v717 = vmin.f32 %v557, 6.0
      %v718 = vmin.f32 %v558, 6.0
      %v719 = vmin.f32 %v559, 6.0
      %v720 = vmin.f32 %v560, 6.0
      %v721 = vmin.f32 %v561, 6.0
      %v722 = vmin.f32 %v562, 6.0
      %v723 = vmin.f32 %v563, 6.0
      %v724 = vmin.f32 %v564, 6.0
      %v725 = vmin.f32 %v565, 6.0
      %v726 = vmin.f32 %v566, 6.0
      %v727 = vmin.f32 %v567, 6.0
      %v728 = vmin.f32 %v568, 6.0
      %v729 = vmin.f32 %v569, 6.0
      %v730 = vmin.f32 %v570, 6.0
      %v731 = vmin.f32 %v571, 6.0
      %v732 = vmin.f32 %v572, 6.0
      %v733 = vmin.f32 %v573, 6.0
      %v734 = vmin.f32 %v574, 6.0
      %v735 = vmin.f32 %v575, 6.0
      %v736 = vmin.f32 %v576, 6.0
      %v737 = vmin.f32 %v577, 6.0
      %v738 = vmin.f32 %v578, 6.0
      %v739 = vmin.f32 %v579, 6.0
      %v740 = vmin.f32 %v580, 6.0
      %v741 = vmin.f32 %v581, 6.0
      %v742 = vmin.f32 %v582, 6.0
      %v743 = vmin.f32 %v583, 6.0
      %v744 = vmin.f32 %v584, 6.0
      %v745 = vmin.f32 %v585, 6.0
      %v746 = vmin.f32 %v586, 6.0
      %v747 = vmin.f32 %v587, 6.0
      %v748 = vmin.f32 %v588, 6.0
      %v749 = vmin.f32 %v589, 6.0
      %v750 = vmin.f32 %v590, 6.0
      %v751 = vmin.f32 %v591, 6.0
      %v752 = vmin.f32 %v592, 6.0
      %v753 = vmin.f32 %v593, 6.0
      %v754 = vmin.f32 %v594, 6.0
      %v755 = vmin.f32 %v595, 6.0
      %v756 = vmin.f32 %v596, 6.0
      %v757 = vmul.f32 %v597, 0.16666667
      %v758 = vmul.f32 %v598, 0.16666667
      %v759 = vmul.f32 %v599, 0.16666667
      %v760 = vmul.f32 %v600, 0.16666667
      %v761 = vmul.f32 %v601, 0.16666667
      %v762 = vmul.f32 %v602, 0.16666667
      %v763 = vmul.f32 %v603, 0.16666667
      %v764 = vmul.f32 %v604, 0.16666667
      %v765 = vmul.f32 %v605, 0.16666667
      %v766 = vmul.f32 %v606, 0.16666667
      %v767 = vmul.f32 %v607, 0.16666667
      %v768 = vmul.f32 %v608, 0.16666667
      %v769 = vmul.f32 %v609, 0.16666667
      %v770 = vmul.f32 %v610, 0.16666667
      %v771 = vmul.f32 %v611, 0.16666667
      %v772 = vmul.f32 %v612, 0.16666667
      %v773 = vmul.f32 %v613, 0.16666667
      %v774 = vmul.f32 %v614, 0.16666667
      %v775 = vmul.f32 %v615, 0.16666667
      %v776 = vmul.f32 %v616, 0.16666667
      %v777 = vmul.f32 %v617, 0.16666667
      %v778 = vmul.f32 %v618, 0.16666667
      %v779 = vmul.f32 %v619, 0.16666667
      %v780 = vmul.f32 %v620, 0.16666667
      %v781 = vmul.f32 %v621, 0.16666667
      %v782 = vmul.f32 %v622, 0.16666667
      %v783 = vmul.f32 %v623, 0.16666667
      %v784 = vmul.f32 %v624, 0.16666667
      %v785 = vmul.f32 %v625, 0.16666667
      %v786 = vmul.f32 %v626, 0.16666667
      %v787 = vmul.f32 %v627, 0.16666667
      %v788 = vmul.f32 %v628, 0.16666667
      %v789 = vmul.f32 %v629, 0.16666667
      %v790 = vmul.f32 %v630, 0.16666667
      %v791 = vmul.f32 %v631, 0.16666667
      %v792 = vmul.f32 %v632, 0.16666667
      %v793 = vmul.f32 %v633, 0.16666667
      %v794 = vmul.f32 %v634, 0.16666667
      %v795 = vmul.f32 %v635, 0.16666667
      %v796 = vmul.f32 %v636, 0.16666667
      %v797 = vmul.f32 %v637, 0.16666667
      %v798 = vmul.f32 %v638, 0.16666667
      %v799 = vmul.f32 %v639, 0.16666667
      %v800 = vmul.f32 %v640, 0.16666667
      %v801 = vmul.f32 %v641, 0.16666667
      %v802 = vmul.f32 %v642, 0.16666667
      %v803 = vmul.f32 %v643, 0.16666667
      %v804 = vmul.f32 %v644, 0.16666667
      %v805 = vmul.f32 %v645, 0.16666667
      %v806 = vmul.f32 %v646, 0.16666667
      %v807 = vmul.f32 %v647, 0.16666667
      %v808 = vmul.f32 %v648, 0.16666667
      %v809 = vmul.f32 %v649, 0.16666667
      %v810 = vmul.f32 %v650, 0.16666667
      %v811 = vmul.f32 %v651, 0.16666667
      %v812 = vmul.f32 %v652, 0.16666667
      %v813 = vmul.f32 %v653, 0.16666667
      %v814 = vmul.f32 %v654, 0.16666667
      %v815 = vmul.f32 %v655, 0.16666667
      %v816 = vmul.f32 %v656, 0.16666667
      %v817 = vmul.f32 %v657, 0.16666667
      %v818 = vmul.f32 %v658, 0.16666667
      %v819 = vmul.f32 %v659, 0.16666667
      %v820 = vmul.f32 %v660, 0.16666667
      %v821 = vmul.f32 %v661, 0.16666667
      %v822 = vmul.f32 %v662, 0.16666667
      %v823 = vmul.f32 %v663, 0.16666667
      %v824 = vmul.f32 %v664, 0.16666667
      %v825 = vmul.f32 %v665, 0.16666667
      %v826 = vmul.f32 %v666, 0.16666667
      %v827 = vmul.f32 %v667, 0.16666667
      %v828 = vmul.f32 %v668, 0.16666667
      %v829 = vmul.f32 %v669, 0.16666667
      %v830 = vmul.f32 %v670, 0.16666667
      %v831 = vmul.f32 %v671, 0.16666667
      %v832 = vmul.f32 %v672, 0.16666667
      %v833 = vmul.f32 %v673, 0.16666667
      %v834 = vmul.f32 %v674, 0.16666667
      %v835 = vmul.f32 %v675, 0.16666667
      %v836 = vmul.f32 %v676, 0.16666667
      %v837 = vmul.f32 %v677, 0.16666667
      %v838 = vmul.f32 %v678, 0.16666667
      %v839 = vmul.f32 %v679, 0.16666667
      %v840 = vmul.f32 %v680, 0.16666667
      %v841 = vmul.f32 %v681, 0.16666667
      %v842 = vmul.f32 %v682, 0.16666667
      %v843 = vmul.f32 %v683, 0.16666667
      %v844 = vmul.f32 %v684, 0.16666667
      %v845 = vmul.f32 %v685, 0.16666667
      %v846 = vmul.f32 %v686, 0.16666667
      %v847 = vmul.f32 %v687, 0.16666667
      %v848 = vmul.f32 %v688, 0.16666667
      %v849 = vmul.f32 %v689, 0.16666667
      %v850 = vmul.f32 %v690, 0.16666667
      %v851 = vmul.f32 %v691, 0.16666667
      %v852 = vmul.f32 %v692, 0.16666667
      %v853 = vmul.f32 %v693, 0.16666667
      %v854 = vmul.f32 %v694, 0.16666667
      %v855 = vmul.f32 %v695, 0.16666667
      %v856 = vmul.f32 %v696, 0.16666667
      %v857 = vmul.f32 %v697, 0.16666667
      %v858 = vmul.f32 %v698, 0.16666667
      %v859 = vmul.f32 %v699, 0.16666667
      %v860 = vmul.f32 %v700, 0.16666667
      %v861 = vmul.f32 %v701, 0.16666667
      %v862 = vmul.f32 %v702, 0.16666667
      %v863 = vmul.f32 %v703, 0.16666667
      %v864 = vmul.f32 %v704, 0.16666667
      %v865 = vmul.f32 %v705, 0.16666667
      %v866 = vmul.f32 %v706, 0.16666667
      %v867 = vmul.f32 %v707, 0.16666667
      %v868 = vmul.f32 %v708, 0.16666667
      %v869 = vmul.f32 %v709, 0.16666667
      %v870 = vmul.f32 %v710, 0.16666667
      %v871 = vmul.f32 %v711, 0.16666667
      %v872 = vmul.f32 %v712, 0.16666667
      %v873 = vmul.f32 %v713, 0.16666667
      %v874 = vmul.f32 %v714, 0.16666667
      %v875 = vmul.f32 %v715, 0.16666667
      %v876 = vmul.f32 %v716, 0.16666667
      %v877 = vmul.f32 %v717, 0.16666667
      %v878 = vmul.f32 %v718, 0.16666667
      %v879 = vmul.f32 %v719, 0.16666667
      %v880 = vmul.f32 %v720, 0.16666667
      %v881 = vmul.f32 %v721, 0.16666667
      %v882 = vmul.f32 %v722, 0.16666667
      %v883 = vmul.f32 %v723, 0.16666667
      %v884 = vmul.f32 %v724, 0.16666667
      %v885 = vmul.f32 %v725, 0.16666667
      %v886 = vmul.f32 %v726, 0.16666667
      %v887 = vmul.f32 %v727, 0.16666667
      %v888 = vmul.f32 %v728, 0.16666667
      %v889 = vmul.f32 %v729, 0.16666667
      %v890 = vmul.f32 %v730, 0.16666667
      %v891 = vmul.f32 %v731, 0.16666667
      %v892 = vmul.f32 %v732, 0.16666667
      %v893 = vmul.f32 %v733, 0.16666667
      %v894 = vmul.f32 %v734, 0.16666667
      %v895 = vmul.f32 %v735, 0.16666667
      %v896 = vmul.f32 %v736, 0.16666667
      %v897 = vmul.f32 %v737, 0.16666667
      %v898 = vmul.f32 %v738, 0.16666667
      %v899 = vmul.f32 %v739, 0.16666667
      %v900 = vmul.f32 %v740, 0.16666667
      %v901 = vmul.f32 %v741, 0.16666667
      %v902 = vmul.f32 %v742, 0.16666667
      %v903 = vmul.f32 %v743, 0.16666667
      %v904 = vmul.f32 %v744, 0.16666667
      %v905 = vmul.f32 %v745, 0.16666667
      %v906 = vmul.f32 %v746, 0.16666667
      %v907 = vmul.f32 %v747, 0.16666667
      %v908 = vmul.f32 %v748, 0.16666667
      %v909 = vmul.f32 %v749, 0.16666667
      %v910 = vmul.f32 %v750, 0.16666667
      %v911 = vmul.f32 %v751, 0.16666667
      %v912 = vmul.f32 %v752, 0.16666667
      %v913 = vmul.f32 %v753, 0.16666667
      %v914 = vmul.f32 %v754, 0.16666667
      %v915 = vmul.f32 %v755, 0.16666667
      %v916 = vmul.f32 %v756, 0.16666667
      %v917 = vmul.f32 %v117, %v757
      %v918 = vmul.f32 %v118, %v758
      %v919 = vmul.f32 %v119, %v759
      %v920 = vmul.f32 %v120, %v760
      %v921 = vmul.f32 %v121, %v761
      %v922 = vmul.f32 %v122, %v762
      %v923 = vmul.f32 %v123, %v763
      %v924 = vmul.f32 %v124, %v764
      %v925 = vmul.f32 %v125, %v765
      %v926 = vmul.f32 %v126, %v766
      %v927 = vmul.f32 %v127, %v767
      %v928 = vmul.f32 %v128, %v768
      %v929 = vmul.f32 %v129, %v769
      %v930 = vmul.f32 %v130, %v770
      %v931 = vmul.f32 %v131, %v771
      %v932 = vmul.f32 %v132, %v772
      %v933 = vmul.f32 %v133, %v773
      %v934 = vmul.f32 %v134, %v774
      %v935 = vmul.f32 %v135, %v775
      %v936 = vmul.f32 %v136, %v776
      %v937 = vmul.f32 %v137, %v777
      %v938 = vmul.f32 %v138, %v778
      %v939 = vmul.f32 %v139, %v779
      %v940 = vmul.f32 %v140, %v780
      %v941 = vmul.f32 %v141, %v781
      %v942 = vmul.f32 %v142, %v782
      %v943 = vmul.f32 %v143, %v783
      %v944 = vmul.f32 %v144, %v784
      %v945 = vmul.f32 %v145, %v785
      %v946 = vmul.f32 %v146, %v786
      %v947 = vmul.f32 %v147, %v787
      %v948 = vmul.f32 %v148, %v788
      %v949 = vmul.f32 %v149, %v789
      %v950 = vmul.f32 %v150, %v790
      %v951 = vmul.f32 %v151, %v791
      %v952 = vmul.f32 %v152, %v792
      %v953 = vmul.f32 %v153, %v793
      %v954 = vmul.f32 %v154, %v794
      %v955 = vmul.f32 %v155, %v795
      %v956 = vmul.f32 %v156, %v796
      %v957 = vmul.f32 %v157, %v797
      %v958 = vmul.f32 %v158, %v798
      %v959 = vmul.f32 %v159, %v799
      %v960 = vmul.f32 %v160, %v800
      %v961 = vmul.f32 %v161, %v801
      %v962 = vmul.f32 %v162, %v802
      %v963 = vmul.f32 %v163, %v803
      %v964 = vmul.f32 %v164, %v804
      %v965 = vmul.f32 %v165, %v805
      %v966 = vmul.f32 %v166, %v806
      %v967 = vmul.f32 %v167, %v807
      %v968 = vmul.f32 %v168, %v808
      %v969 = vmul.f32 %v169, %v809
      %v970 = vmul.f32 %v170, %v810
      %v971 = vmul.f32 %v171, %v811
      %v972 = vmul.f32 %v172, %v812
      %v973 = vmul.f32 %v173, %v813
      %v974 = vmul.f32 %v174, %v814
      %v975 = vmul.f32 %v175, %v815
      %v976 = vmul.f32 %v176, %v816
      %v977 = vmul.f32 %v177, %v817
      %v978 = vmul.f32 %v178, %v818
      %v979 = vmul.f32 %v179, %v819
      %v980 = vmul.f32 %v180, %v820
      %v981 = vmul.f32 %v181, %v821
      %v982 = vmul.f32 %v182, %v822
      %v983 = vmul.f32 %v183, %v823
      %v984 = vmul.f32 %v184, %v824
      %v985 = vmul.f32 %v185, %v825
      %v986 = vmul.f32 %v186, %v826
      %v987 = vmul.f32 %v187, %v827
      %v988 = vmul.f32 %v188, %v828
      %v989 = vmul.f32 %v189, %v829
      %v990 = vmul.f32 %v190, %v830
      %v991 = vmul.f32 %v191, %v831
      %v992 = vmul.f32 %v192, %v832
      %v993 = vmul.f32 %v193, %v833
      %v994 = vmul.f32 %v194, %v834
      %v995 = vmul.f32 %v195, %v835
      %v996 = vmul.f32 %v196, %v836
      %v997 = vmul.f32 %v197, %v837
      %v998 = vmul.f32 %v198, %v838
      %v999 = vmul.f32 %v199, %v839
      %v1000 = vmul.f32 %v200, %v840
      %v1001 = vmul.f32 %v201, %v841
      %v1002 = vmul.f32 %v202, %v842
      %v1003 = vmul.f32 %v203, %v843
      %v1004 = vmul.f32 %v204, %v844
      %v1005 = vmul.f32 %v205, %v845
      %v1006 = vmul.f32 %v206, %v846
      %v1007 = vmul.f32 %v207, %v847
      %v1008 = vmul.f32 %v208, %v848
      %v1009 = vmul.f32 %v209, %v849
      %v1010 = vmul.f32 %v210, %v850
      %v1011 = vmul.f32 %v211, %v851
      %v1012 = vmul.f32 %v212, %v852
      %v1013 = vmul.f32 %v213, %v853
      %v1014 = vmul.f32 %v214, %v854
      %v1015 = vmul.f32 %v215, %v855
      %v1016 = vmul.f32 %v216, %v856
      %v1017 = vmul.f32 %v217, %v857
      %v1018 = vmul.f32 %v218, %v858
      %v1019 = vmul.f32 %v219, %v859
      %v1020 = vmul.f32 %v220, %v860
      %v1021 = vmul.f32 %v221, %v861
      %v1022 = vmul.f32 %v222, %v862
      %v1023 = vmul.f32 %v223, %v863
      %v1024 = vmul.f32 %v224, %v864
      %v1025 = vmul.f32 %v225, %v865
      %v1026 = vmul.f32 %v226, %v866
      %v1027 = vmul.f32 %v227, %v867
      %v1028 = vmul.f32 %v228, %v868
      %v1029 = vmul.f32 %v229, %v869
      %v1030 = vmul.f32 %v230, %v870
      %v1031 = vmul.f32 %v231, %v871
      %v1032 = vmul.f32 %v232, %v872
      %v1033 = vmul.f32 %v233, %v873
      %v1034 = vmul.f32 %v234, %v874
      %v1035 = vmul.f32 %v235, %v875
      %v1036 = vmul.f32 %v236, %v876
      %v1037 = vmul.f32 %v237, %v877
      %v1038 = vmul.f32 %v238, %v878
      %v1039 = vmul.f32 %v239, %v879
      %v1040 = vmul.f32 %v240, %v880
      %v1041 = vmul.f32 %v241, %v881
      %v1042 = vmul.f32 %v242, %v882
      %v1043 = vmul.f32 %v243, %v883
      %v1044 = vmul.f32 %v244, %v884
      %v1045 = vmul.f32 %v245, %v885
      %v1046 = vmul.f32 %v246, %v886
      %v1047 = vmul.f32 %v247, %v887
      %v1048 = vmul.f32 %v248, %v888
      %v1049 = vmul.f32 %v249, %v889
      %v1050 = vmul.f32 %v250, %v890
      %v1051 = vmul.f32 %v251, %v891
      %v1052 = vmul.f32 %v252, %v892
      %v1053 = vmul.f32 %v253, %v893
      %v1054 = vmul.f32 %v254, %v894
      %v1055 = vmul.f32 %v255, %v895
      %v1056 = vmul.f32 %v256, %v896
      %v1057 = vmul.f32 %v257, %v897
      %v1058 = vmul.f32 %v258, %v898
      %v1059 = vmul.f32 %v259, %v899
      %v1060 = vmul.f32 %v260, %v900
      %v1061 = vmul.f32 %v261, %v901
      %v1062 = vmul.f32 %v262, %v902
      %v1063 = vmul.f32 %v263, %v903
      %v1064 = vmul.f32 %v264, %v904
      %v1065 = vmul.f32 %v265, %v905
      %v1066 = vmul.f32 %v266, %v906
      %v1067 = vmul.f32 %v267, %v907
      %v1068 = vmul.f32 %v268, %v908
      %v1069 = vmul.f32 %v269, %v909
      %v1070 = vmul.f32 %v270, %v910
      %v1071 = vmul.f32 %v271, %v911
      %v1072 = vmul.f32 %v272, %v912
      %v1073 = vmul.f32 %v273, %v913
      %v1074 = vmul.f32 %v274, %v914
      %v1075 = vmul.f32 %v275, %v915
      %v1076 = vmul.f32 %v276, %v916
      %vm1077 = vcmask 293888
      %1078 = vst.msk [vmem:[%s116] sm:$0xff] %vm1077, %v917
      %1079 = vst.msk [vmem:[%s116 + $0x8] sm:$0xff] %vm1077, %v918
      %1080 = vst.msk [vmem:[%s116 + $0x10] sm:$0xff] %vm1077, %v919
      %1081 = vst.msk [vmem:[%s116 + $0x18] sm:$0xff] %vm1077, %v920
      %vm1082 = vcmask 289792
      %1083 = vst.msk [vmem:[%s116 + $0x20] sm:$0xf] %vm1082, %v921
      %1084 = vst.msk [vmem:[%s116 + $0x28] sm:$0xff] %vm1077, %v922
      %1085 = vst.msk [vmem:[%s116 + $0x30] sm:$0xff] %vm1077, %v923
      %1086 = vst.msk [vmem:[%s116 + $0x38] sm:$0xff] %vm1077, %v924
      %1087 = vst.msk [vmem:[%s116 + $0x40] sm:$0xff] %vm1077, %v925
      %1088 = vst.msk [vmem:[%s116 + $0x48] sm:$0xf] %vm1082, %v926
      %1089 = vst.msk [vmem:[%s116 + $0x50] sm:$0xff] %vm1077, %v927
      %1090 = vst.msk [vmem:[%s116 + $0x58] sm:$0xff] %vm1077, %v928
      %1091 = vst.msk [vmem:[%s116 + $0x60] sm:$0xff] %vm1077, %v929
      %1092 = vst.msk [vmem:[%s116 + $0x68] sm:$0xff] %vm1077, %v930
      %1093 = vst.msk [vmem:[%s116 + $0x70] sm:$0xf] %vm1082, %v931
      %1094 = vst.msk [vmem:[%s116 + $0x78] sm:$0xff] %vm1077, %v932
      %1095 = vst.msk [vmem:[%s116 + $0x80] sm:$0xff] %vm1077, %v933
      %1096 = vst.msk [vmem:[%s116 + $0x88] sm:$0xff] %vm1077, %v934
      %1097 = vst.msk [vmem:[%s116 + $0x90] sm:$0xff] %vm1077, %v935
      %1098 = vst.msk [vmem:[%s116 + $0x98] sm:$0xf] %vm1082, %v936
      %1099 = vst.msk [vmem:[%s116 + $0xa0] sm:$0xff] %vm1077, %v937
      %1100 = vst.msk [vmem:[%s116 + $0xa8] sm:$0xff] %vm1077, %v938
      %1101 = vst.msk [vmem:[%s116 + $0xb0] sm:$0xff] %vm1077, %v939
      %1102 = vst.msk [vmem:[%s116 + $0xb8] sm:$0xff] %vm1077, %v940
      %1103 = vst.msk [vmem:[%s116 + $0xc0] sm:$0xf] %vm1082, %v941
      %1104 = vst.msk [vmem:[%s116 + $0xc8] sm:$0xff] %vm1077, %v942
      %1105 = vst.msk [vmem:[%s116 + $0xd0] sm:$0xff] %vm1077, %v943
      %1106 = vst.msk [vmem:[%s116 + $0xd8] sm:$0xff] %vm1077, %v944
      %1107 = vst.msk [vmem:[%s116 + $0xe0] sm:$0xff] %vm1077, %v945
      %1108 = vst.msk [vmem:[%s116 + $0xe8] sm:$0xf] %vm1082, %v946
      %1109 = vst.msk [vmem:[%s116 + $0xf0] sm:$0xff] %vm1077, %v947
      %1110 = vst.msk [vmem:[%s116 + $0xf8] sm:$0xff] %vm1077, %v948
      %1111 = vst.msk [vmem:[%s116 + $0x100] sm:$0xff] %vm1077, %v949
      %1112 = vst.msk [vmem:[%s116 + $0x108] sm:$0xff] %vm1077, %v950
      %1113 = vst.msk [vmem:[%s116 + $0x110] sm:$0xf] %vm1082, %v951
      %1114 = vst.msk [vmem:[%s116 + $0x118] sm:$0xff] %vm1077, %v952
      %1115 = vst.msk [vmem:[%s116 + $0x120] sm:$0xff] %vm1077, %v953
      %1116 = vst.msk [vmem:[%s116 + $0x128] sm:$0xff] %vm1077, %v954
      %1117 = vst.msk [vmem:[%s116 + $0x130] sm:$0xff] %vm1077, %v955
      %1118 = vst.msk [vmem:[%s116 + $0x138] sm:$0xf] %vm1082, %v956
      %1119 = vst.msk [vmem:[%s116 + $0x140] sm:$0xff] %vm1077, %v957
      %1120 = vst.msk [vmem:[%s116 + $0x148] sm:$0xff] %vm1077, %v958
      %1121 = vst.msk [vmem:[%s116 + $0x150] sm:$0xff] %vm1077, %v959
      %1122 = vst.msk [vmem:[%s116 + $0x158] sm:$0xff] %vm1077, %v960
      %1123 = vst.msk [vmem:[%s116 + $0x160] sm:$0xf] %vm1082, %v961
      %1124 = vst.msk [vmem:[%s116 + $0x168] sm:$0xff] %vm1077, %v962
      %1125 = vst.msk [vmem:[%s116 + $0x170] sm:$0xff] %vm1077, %v963
      %1126 = vst.msk [vmem:[%s116 + $0x178] sm:$0xff] %vm1077, %v964
      %1127 = vst.msk [vmem:[%s116 + $0x180] sm:$0xff] %vm1077, %v965
      %1128 = vst.msk [vmem:[%s116 + $0x188] sm:$0xf] %vm1082, %v966
      %1129 = vst.msk [vmem:[%s116 + $0x190] sm:$0xff] %vm1077, %v967
      %1130 = vst.msk [vmem:[%s116 + $0x198] sm:$0xff] %vm1077, %v968
      %1131 = vst.msk [vmem:[%s116 + $0x1a0] sm:$0xff] %vm1077, %v969
      %1132 = vst.msk [vmem:[%s116 + $0x1a8] sm:$0xff] %vm1077, %v970
      %1133 = vst.msk [vmem:[%s116 + $0x1b0] sm:$0xf] %vm1082, %v971
      %1134 = vst.msk [vmem:[%s116 + $0x1b8] sm:$0xff] %vm1077, %v972
      %1135 = vst.msk [vmem:[%s116 + $0x1c0] sm:$0xff] %vm1077, %v973
      %1136 = vst.msk [vmem:[%s116 + $0x1c8] sm:$0xff] %vm1077, %v974
      %1137 = vst.msk [vmem:[%s116 + $0x1d0] sm:$0xff] %vm1077, %v975
      %1138 = vst.msk [vmem:[%s116 + $0x1d8] sm:$0xf] %vm1082, %v976
      %1139 = vst.msk [vmem:[%s116 + $0x1e0] sm:$0xff] %vm1077, %v977
      %1140 = vst.msk [vmem:[%s116 + $0x1e8] sm:$0xff] %vm1077, %v978
      %1141 = vst.msk [vmem:[%s116 + $0x1f0] sm:$0xff] %vm1077, %v979
      %1142 = vst.msk [vmem:[%s116 + $0x1f8] sm:$0xff] %vm1077, %v980
      %1143 = vst.msk [vmem:[%s116 + $0x200] sm:$0xf] %vm1082, %v981
      %1144 = vst.msk [vmem:[%s116 + $0x208] sm:$0xff] %vm1077, %v982
      %1145 = vst.msk [vmem:[%s116 + $0x210] sm:$0xff] %vm1077, %v983
      %1146 = vst.msk [vmem:[%s116 + $0x218] sm:$0xff] %vm1077, %v984
      %1147 = vst.msk [vmem:[%s116 + $0x220] sm:$0xff] %vm1077, %v985
      %1148 = vst.msk [vmem:[%s116 + $0x228] sm:$0xf] %vm1082, %v986
      %1149 = vst.msk [vmem:[%s116 + $0x230] sm:$0xff] %vm1077, %v987
      %1150 = vst.msk [vmem:[%s116 + $0x238] sm:$0xff] %vm1077, %v988
      %1151 = vst.msk [vmem:[%s116 + $0x240] sm:$0xff] %vm1077, %v989
      %1152 = vst.msk [vmem:[%s116 + $0x248] sm:$0xff] %vm1077, %v990
      %1153 = vst.msk [vmem:[%s116 + $0x250] sm:$0xf] %vm1082, %v991
      %1154 = vst.msk [vmem:[%s116 + $0x258] sm:$0xff] %vm1077, %v992
      %1155 = vst.msk [vmem:[%s116 + $0x260] sm:$0xff] %vm1077, %v993
      %1156 = vst.msk [vmem:[%s116 + $0x268] sm:$0xff] %vm1077, %v994
      %1157 = vst.msk [vmem:[%s116 + $0x270] sm:$0xff] %vm1077, %v995
      %1158 = vst.msk [vmem:[%s116 + $0x278] sm:$0xf] %vm1082, %v996
      %1159 = vst.msk [vmem:[%s116 + $0x280] sm:$0xff] %vm1077, %v997
      %1160 = vst.msk [vmem:[%s116 + $0x288] sm:$0xff] %vm1077, %v998
      %1161 = vst.msk [vmem:[%s116 + $0x290] sm:$0xff] %vm1077, %v999
      %1162 = vst.msk [vmem:[%s116 + $0x298] sm:$0xff] %vm1077, %v1000
      %1163 = vst.msk [vmem:[%s116 + $0x2a0] sm:$0xf] %vm1082, %v1001
      %1164 = vst.msk [vmem:[%s116 + $0x2a8] sm:$0xff] %vm1077, %v1002
      %1165 = vst.msk [vmem:[%s116 + $0x2b0] sm:$0xff] %vm1077, %v1003
      %1166 = vst.msk [vmem:[%s116 + $0x2b8] sm:$0xff] %vm1077, %v1004
      %1167 = vst.msk [vmem:[%s116 + $0x2c0] sm:$0xff] %vm1077, %v1005
      %1168 = vst.msk [vmem:[%s116 + $0x2c8] sm:$0xf] %vm1082, %v1006
      %1169 = vst.msk [vmem:[%s116 + $0x2d0] sm:$0xff] %vm1077, %v1007
      %1170 = vst.msk [vmem:[%s116 + $0x2d8] sm:$0xff] %vm1077, %v1008
      %1171 = vst.msk [vmem:[%s116 + $0x2e0] sm:$0xff] %vm1077, %v1009
      %1172 = vst.msk [vmem:[%s116 + $0x2e8] sm:$0xff] %vm1077, %v1010
      %1173 = vst.msk [vmem:[%s116 + $0x2f0] sm:$0xf] %vm1082, %v1011
      %1174 = vst.msk [vmem:[%s116 + $0x2f8] sm:$0xff] %vm1077, %v1012
      %1175 = vst.msk [vmem:[%s116 + $0x300] sm:$0xff] %vm1077, %v1013
      %1176 = vst.msk [vmem:[%s116 + $0x308] sm:$0xff] %vm1077, %v1014
      %1177 = vst.msk [vmem:[%s116 + $0x310] sm:$0xff] %vm1077, %v1015
      %1178 = vst.msk [vmem:[%s116 + $0x318] sm:$0xf] %vm1082, %v1016
      %1179 = vst.msk [vmem:[%s116 + $0x320] sm:$0xff] %vm1077, %v1017
      %1180 = vst.msk [vmem:[%s116 + $0x328] sm:$0xff] %vm1077, %v1018
      %1181 = vst.msk [vmem:[%s116 + $0x330] sm:$0xff] %vm1077, %v1019
      %1182 = vst.msk [vmem:[%s116 + $0x338] sm:$0xff] %vm1077, %v1020
      %1183 = vst.msk [vmem:[%s116 + $0x340] sm:$0xf] %vm1082, %v1021
      %1184 = vst.msk [vmem:[%s116 + $0x348] sm:$0xff] %vm1077, %v1022
      %1185 = vst.msk [vmem:[%s116 + $0x350] sm:$0xff] %vm1077, %v1023
      %1186 = vst.msk [vmem:[%s116 + $0x358] sm:$0xff] %vm1077, %v1024
      %1187 = vst.msk [vmem:[%s116 + $0x360] sm:$0xff] %vm1077, %v1025
      %1188 = vst.msk [vmem:[%s116 + $0x368] sm:$0xf] %vm1082, %v1026
      %1189 = vst.msk [vmem:[%s116 + $0x370] sm:$0xff] %vm1077, %v1027
      %1190 = vst.msk [vmem:[%s116 + $0x378] sm:$0xff] %vm1077, %v1028
      %1191 = vst.msk [vmem:[%s116 + $0x380] sm:$0xff] %vm1077, %v1029
      %1192 = vst.msk [vmem:[%s116 + $0x388] sm:$0xff] %vm1077, %v1030
      %1193 = vst.msk [vmem:[%s116 + $0x390] sm:$0xf] %vm1082, %v1031
      %1194 = vst.msk [vmem:[%s116 + $0x398] sm:$0xff] %vm1077, %v1032
      %1195 = vst.msk [vmem:[%s116 + $0x3a0] sm:$0xff] %vm1077, %v1033
      %1196 = vst.msk [vmem:[%s116 + $0x3a8] sm:$0xff] %vm1077, %v1034
      %1197 = vst.msk [vmem:[%s116 + $0x3b0] sm:$0xff] %vm1077, %v1035
      %1198 = vst.msk [vmem:[%s116 + $0x3b8] sm:$0xf] %vm1082, %v1036
      %1199 = vst.msk [vmem:[%s116 + $0x3c0] sm:$0xff] %vm1077, %v1037
      %1200 = vst.msk [vmem:[%s116 + $0x3c8] sm:$0xff] %vm1077, %v1038
      %1201 = vst.msk [vmem:[%s116 + $0x3d0] sm:$0xff] %vm1077, %v1039
      %1202 = vst.msk [vmem:[%s116 + $0x3d8] sm:$0xff] %vm1077, %v1040
      %1203 = vst.msk [vmem:[%s116 + $0x3e0] sm:$0xf] %vm1082, %v1041
      %1204 = vst.msk [vmem:[%s116 + $0x3e8] sm:$0xff] %vm1077, %v1042
      %1205 = vst.msk [vmem:[%s116 + $0x3f0] sm:$0xff] %vm1077, %v1043
      %1206 = vst.msk [vmem:[%s116 + $0x3f8] sm:$0xff] %vm1077, %v1044
      %1207 = vst.msk [vmem:[%s116 + $0x400] sm:$0xff] %vm1077, %v1045
      %1208 = vst.msk [vmem:[%s116 + $0x408] sm:$0xf] %vm1082, %v1046
      %1209 = vst.msk [vmem:[%s116 + $0x410] sm:$0xff] %vm1077, %v1047
      %1210 = vst.msk [vmem:[%s116 + $0x418] sm:$0xff] %vm1077, %v1048
      %1211 = vst.msk [vmem:[%s116 + $0x420] sm:$0xff] %vm1077, %v1049
      %1212 = vst.msk [vmem:[%s116 + $0x428] sm:$0xff] %vm1077, %v1050
      %1213 = vst.msk [vmem:[%s116 + $0x430] sm:$0xf] %vm1082, %v1051
      %1214 = vst.msk [vmem:[%s116 + $0x438] sm:$0xff] %vm1077, %v1052
      %1215 = vst.msk [vmem:[%s116 + $0x440] sm:$0xff] %vm1077, %v1053
      %1216 = vst.msk [vmem:[%s116 + $0x448] sm:$0xff] %vm1077, %v1054
      %1217 = vst.msk [vmem:[%s116 + $0x450] sm:$0xff] %vm1077, %v1055
      %1218 = vst.msk [vmem:[%s116 + $0x458] sm:$0xf] %vm1082, %v1056
      %1219 = vst.msk [vmem:[%s116 + $0x460] sm:$0xff] %vm1077, %v1057
      %1220 = vst.msk [vmem:[%s116 + $0x468] sm:$0xff] %vm1077, %v1058
      %1221 = vst.msk [vmem:[%s116 + $0x470] sm:$0xff] %vm1077, %v1059
      %1222 = vst.msk [vmem:[%s116 + $0x478] sm:$0xff] %vm1077, %v1060
      %1223 = vst.msk [vmem:[%s116 + $0x480] sm:$0xf] %vm1082, %v1061
      %1224 = vst.msk [vmem:[%s116 + $0x488] sm:$0xff] %vm1077, %v1062
      %1225 = vst.msk [vmem:[%s116 + $0x490] sm:$0xff] %vm1077, %v1063
      %1226 = vst.msk [vmem:[%s116 + $0x498] sm:$0xff] %vm1077, %v1064
      %1227 = vst.msk [vmem:[%s116 + $0x4a0] sm:$0xff] %vm1077, %v1065
      %1228 = vst.msk [vmem:[%s116 + $0x4a8] sm:$0xf] %vm1082, %v1066
      %1229 = vst.msk [vmem:[%s116 + $0x4b0] sm:$0xff] %vm1077, %v1067
      %1230 = vst.msk [vmem:[%s116 + $0x4b8] sm:$0xff] %vm1077, %v1068
      %1231 = vst.msk [vmem:[%s116 + $0x4c0] sm:$0xff] %vm1077, %v1069
      %1232 = vst.msk [vmem:[%s116 + $0x4c8] sm:$0xff] %vm1077, %v1070
      %1233 = vst.msk [vmem:[%s116 + $0x4d0] sm:$0xf] %vm1082, %v1071
      %1234 = vst.msk [vmem:[%s116 + $0x4d8] sm:$0xff] %vm1077, %v1072
      %1235 = vst.msk [vmem:[%s116 + $0x4e0] sm:$0xff] %vm1077, %v1073
      %1236 = vst.msk [vmem:[%s116 + $0x4e8] sm:$0xff] %vm1077, %v1074
      %1237 = vst.msk [vmem:[%s116 + $0x4f0] sm:$0xff] %vm1077, %v1075
      %1238 = vst.msk [vmem:[%s116 + $0x4f8] sm:$0xf] %vm1082, %v1076
      %p1239 = scmp.lt.s32.totalorder %s12, 7
      %s1240 = scalar_select %p1239, %s12, 7
      %s1241 = smul.addr %s1240, 160
      %s1242 = smul.addr %s1241, 8
      %s1243 = scalar_lea.vmem %s1, %s1242
      // Predicated region
      $region25: #{tpu_custom_call.1} parent=23 // pred_check
        %p1244 = pneg %p56
      $region26: #{tpu_custom_call.1} parent=23 // pred_check_branch
        %1246 = sbr.rel (%p1244) target = $region28
      $region27: #{tpu_custom_call.1} parent=23 // pred_region
        _
      $region28: #{tpu_custom_call.1} parent=23 // pred_fallthru
        _
    $region24: #{tpu_custom_call.1} parent=5 // pred_fallthru
      _
    %p1247 = scmp.le.s32.totalorder 2, %s7
    // Predicated region
    $region29: #{tpu_custom_call.1} parent=5 // pred_check
      %p1248 = pneg %p1247
    $region30: #{tpu_custom_call.1} parent=5 // pred_check_branch
      %1250 = sbr.rel (%p1248) target = $region32
    $region31: #{tpu_custom_call.1} parent=5 // pred_region
      %s1251 = ssub.s32 %s7, 2
      // Predicated region
      $region33: #{tpu_custom_call.1} parent=31 // pred_check
        %p1252 = pneg %p62
      $region34: #{tpu_custom_call.1} parent=31 // pred_check_branch
        %1254 = sbr.rel (%p1252) target = $region36
      $region35: #{tpu_custom_call.1} parent=31 // pred_region
        %p1255 = scmp.lt.s32.totalorder %s13, 7
        %s1256 = scalar_select %p1255, %s13, 7
        %s1257 = smul.addr %s1256, 160
        %s1258 = smul.addr %s1257, 8
        %s1259 = scalar_lea.vmem %s1, %s1258
      $region36: #{tpu_custom_call.1} parent=31 // pred_fallthru
        _
    $region32: #{tpu_custom_call.1} parent=5 // pred_fallthru
      _
  $region6: #{tpu_custom_call.1} parent=0 // loop_footer
    %s11 = sadd.s32 1, %s7
  $region7: #{tpu_custom_call.1} parent=0 // loop_footer_branch
    %6 = sbr.rel target = $region3
  $region8: #{tpu_custom_call.1} parent=0 // loop_exit
    _

</llo_original>
